<compile_context>
chip_gen: v6e
topology: v6e:2x2x1
jax: 0.10.0
libtpu: 0.0.40
codegen_flags: <defaults>
</compile_context>

<pallas_src>
import functools

import jax
import jax.numpy as jnp
from jax.experimental import pallas as pl
from jax.experimental.pallas import tpu as pltpu

EPS = 1e-5


def _bn_relu(x, gamma, beta, inv_b):
    """Training-mode BatchNorm1d (biased batch var) folded to scale/shift, then ReLU."""
    s = jnp.sum(x, axis=0, keepdims=True)
    ss = jnp.sum(x * x, axis=0, keepdims=True)
    mean = s * inv_b
    var = ss * inv_b - mean * mean            # single-pass biased variance
    scale = gamma * jax.lax.rsqrt(var + EPS)  # fold gamma into the scale
    shift = beta - mean * scale               # fold beta/mean into the shift
    return jnp.maximum(x * scale + shift, 0.0)


def vfl_top_kernel(
    a_ref, b_ref,
    g0a_ref, be0a_ref, g0b_ref, be0b_ref, w1a_ref, w1b_ref, b1_ref,
    g1_ref, be1_ref, w2_ref, b2_ref,
    g2_ref, be2_ref, w3_ref, b3_ref,
    g3_ref, be3_ref, w4_ref, b4_ref,
    o_ref,
    *, inv_b,
):
    a = a_ref[...].astype(jnp.float32)
    b = b_ref[...].astype(jnp.float32)

    # block 0: x = fc1top(relu(bn0top(cat(a, b))))
    # bn0top stats are per-feature -> a-half / b-half are independent; the concat
    # is eliminated by splitting W1 into its a/b row halves.
    ha = _bn_relu(a, g0a_ref[...], be0a_ref[...], inv_b)
    hb = _bn_relu(b, g0b_ref[...], be0b_ref[...], inv_b)
    h = (jnp.dot(ha, w1a_ref[...], preferred_element_type=jnp.float32)
         + jnp.dot(hb, w1b_ref[...], preferred_element_type=jnp.float32)
         + b1_ref[...])

    # block 1: x = fc2top(relu(bn1top(x)))
    h = _bn_relu(h, g1_ref[...], be1_ref[...], inv_b)
    h = jnp.dot(h, w2_ref[...], preferred_element_type=jnp.float32) + b2_ref[...]

    # block 2: x = fc3top(relu(bn2top(x)))
    h = _bn_relu(h, g2_ref[...], be2_ref[...], inv_b)
    h = jnp.dot(h, w3_ref[...], preferred_element_type=jnp.float32) + b3_ref[...]

    # block 3: x = fc4top(relu(bn3top(x)))
    h = _bn_relu(h, g3_ref[...], be3_ref[...], inv_b)
    h = jnp.dot(h, w4_ref[...], preferred_element_type=jnp.float32) + b4_ref[...]

    # log_softmax over the feature (lane) axis
    m = jnp.max(h, axis=1, keepdims=True)
    z = h - m
    lse = jnp.log(jnp.sum(jnp.exp(z), axis=1, keepdims=True))
    o_ref[...] = (z - lse).astype(o_ref.dtype)


def init_params(key, model_class=10, dtype=jnp.float32):
    """Deterministic synthetic parameters (Kaiming-normal weights, like weights_init)."""
    d2 = model_class * 2
    d1 = model_class
    ks = jax.random.split(key, 8)

    def kaiming(k, fan_in, fan_out):
        # kaiming_normal_: std = sqrt(2 / fan_in); stored as (in, out) so the
        # kernel can compute x @ W (torch stores (out, in) and does x @ W.T).
        return (jax.random.normal(k, (fan_in, fan_out), dtype) *
                jnp.sqrt(2.0 / fan_in).astype(dtype))

    def bias(k, fan_in, fan_out):
        bound = 1.0 / jnp.sqrt(jnp.asarray(fan_in, dtype))
        return jax.random.uniform(k, (1, fan_out), dtype, -bound, bound)

    params = {
        # fc1top: 2C -> 2C
        "w1": kaiming(ks[0], d2, d2), "b1": bias(ks[1], d2, d2),
        # fc2top: 2C -> C
        "w2": kaiming(ks[2], d2, d1), "b2": bias(ks[3], d2, d1),
        # fc3top: C -> C
        "w3": kaiming(ks[4], d1, d1), "b3": bias(ks[5], d1, d1),
        # fc4top: C -> C
        "w4": kaiming(ks[6], d1, d1), "b4": bias(ks[7], d1, d1),
        # BatchNorm1d params: default init gamma=1, beta=0
        "g0": jnp.ones((1, d2), dtype), "be0": jnp.zeros((1, d2), dtype),
        "g1": jnp.ones((1, d2), dtype), "be1": jnp.zeros((1, d2), dtype),
        "g2": jnp.ones((1, d1), dtype), "be2": jnp.zeros((1, d1), dtype),
        "g3": jnp.ones((1, d1), dtype), "be3": jnp.zeros((1, d1), dtype),
    }
    return params


@functools.partial(jax.jit, static_argnames=("model_class",))
def vfl_top_forward(a, b, params, model_class=10):
    """a, b: (B, model_class). Returns log-probabilities (B, model_class)."""
    B = a.shape[0]
    d1 = model_class

    # Split the first-layer weight / BN params into the a-half and b-half so the
    # (B, 2C) activation concat never materializes (only tiny param slices here).
    w1a = params["w1"][:d1, :]
    w1b = params["w1"][d1:, :]
    g0a = params["g0"][:, :d1]
    g0b = params["g0"][:, d1:]
    be0a = params["be0"][:, :d1]
    be0b = params["be0"][:, d1:]

    ordered = [
        a, b,
        g0a, be0a, g0b, be0b, w1a, w1b, params["b1"],
        params["g1"], params["be1"], params["w2"], params["b2"],
        params["g2"], params["be2"], params["w3"], params["b3"],
        params["g3"], params["be3"], params["w4"], params["b4"],
    ]

    vmem_spec = pl.BlockSpec(memory_space=pltpu.MemorySpace.VMEM)
    kernel = functools.partial(vfl_top_kernel, inv_b=1.0 / float(B))

    out = pl.pallas_call(
        kernel,
        out_shape=jax.ShapeDtypeStruct((B, d1), a.dtype),
        in_specs=[vmem_spec] * len(ordered),
        out_specs=vmem_spec,
    )(*ordered)
    return out


def reference_forward(a, b, params):
    """Pure-JAX reference mirroring the torch forward (training-mode BN, two-pass var)."""
    x = jnp.concatenate([a, b], axis=1).astype(jnp.float32)

    def bn_relu(x, g, be):
        m = jnp.mean(x, axis=0, keepdims=True)
        v = jnp.mean((x - m) ** 2, axis=0, keepdims=True)
        return jnp.maximum(g * (x - m) / jnp.sqrt(v + EPS) + be, 0.0)

    h = bn_relu(x, params["g0"], params["be0"]) @ params["w1"] + params["b1"]
    h = bn_relu(h, params["g1"], params["be1"]) @ params["w2"] + params["b2"]
    h = bn_relu(h, params["g2"], params["be2"]) @ params["w3"] + params["b3"]
    h = bn_relu(h, params["g3"], params["be3"]) @ params["w4"] + params["b4"]
    return jax.nn.log_softmax(h, axis=1)


if __name__ == "__main__":
    model_class = 10   # args.dataset == 'CIFAR10' branch
    batch = 4

    key = jax.random.PRNGKey(0)
    k_a, k_b, k_p = jax.random.split(key, 3)
    a = jax.random.normal(k_a, (batch, model_class), jnp.float32)
    b = jax.random.normal(k_b, (batch, model_class), jnp.float32)
    params = init_params(k_p, model_class=model_class)

    out = vfl_top_forward(a, b, params, model_class=model_class)
    out = jax.block_until_ready(out)

    ref = reference_forward(a, b, params)
    assert out.shape == (batch, model_class)
    assert jnp.allclose(out, ref, atol=1e-4, rtol=1e-4), "mismatch vs JAX reference"
    # log_softmax rows must exponentiate-sum to 1
    assert jnp.allclose(jnp.sum(jnp.exp(out), axis=1), 1.0, atol=1e-4)

    print("KERNEL_OK")
</pallas_src>

<mosaic_0001>
module attributes {stable_mosaic.version = 11 : i64} {
  func.func @vfl_top_kernel(%arg0: memref<4x10xf32, #tpu.memory_space<vmem>>, %arg1: memref<4x10xf32, #tpu.memory_space<vmem>>, %arg2: memref<1x10xf32, #tpu.memory_space<vmem>>, %arg3: memref<1x10xf32, #tpu.memory_space<vmem>>, %arg4: memref<1x10xf32, #tpu.memory_space<vmem>>, %arg5: memref<1x10xf32, #tpu.memory_space<vmem>>, %arg6: memref<10x20xf32, #tpu.memory_space<vmem>>, %arg7: memref<10x20xf32, #tpu.memory_space<vmem>>, %arg8: memref<1x20xf32, #tpu.memory_space<vmem>>, %arg9: memref<1x20xf32, #tpu.memory_space<vmem>>, %arg10: memref<1x20xf32, #tpu.memory_space<vmem>>, %arg11: memref<20x10xf32, #tpu.memory_space<vmem>>, %arg12: memref<1x10xf32, #tpu.memory_space<vmem>>, %arg13: memref<1x10xf32, #tpu.memory_space<vmem>>, %arg14: memref<1x10xf32, #tpu.memory_space<vmem>>, %arg15: memref<10x10xf32, #tpu.memory_space<vmem>>, %arg16: memref<1x10xf32, #tpu.memory_space<vmem>>, %arg17: memref<1x10xf32, #tpu.memory_space<vmem>>, %arg18: memref<1x10xf32, #tpu.memory_space<vmem>>, %arg19: memref<10x10xf32, #tpu.memory_space<vmem>>, %arg20: memref<1x10xf32, #tpu.memory_space<vmem>>, %arg21: memref<4x10xf32, #tpu.memory_space<vmem>>) attributes {dimension_semantics = [], scalar_prefetch = 0 : i64, scratch_operands = 0 : i64, tpu.core_type = #tpu.core_type<tc>} {
    %c0 = arith.constant 0 : index
    %c0_0 = arith.constant 0 : index
    %0 = vector.load %arg0[%c0, %c0_0] : memref<4x10xf32, #tpu.memory_space<vmem>>, vector<4x10xf32>
    %c0_1 = arith.constant 0 : index
    %c0_2 = arith.constant 0 : index
    %1 = vector.load %arg1[%c0_1, %c0_2] : memref<4x10xf32, #tpu.memory_space<vmem>>, vector<4x10xf32>
    %c0_3 = arith.constant 0 : index
    %c0_4 = arith.constant 0 : index
    %2 = vector.load %arg2[%c0_3, %c0_4] : memref<1x10xf32, #tpu.memory_space<vmem>>, vector<1x10xf32>
    %c0_5 = arith.constant 0 : index
    %c0_6 = arith.constant 0 : index
    %3 = vector.load %arg3[%c0_5, %c0_6] : memref<1x10xf32, #tpu.memory_space<vmem>>, vector<1x10xf32>
    %cst = arith.constant dense<0.000000e+00> : vector<10xf32>
    %4 = vector.multi_reduction <add>, %0, %cst [0] : vector<4x10xf32> to vector<10xf32>
    %5 = vector.shape_cast %4 : vector<10xf32> to vector<1x10xf32>
    %6 = arith.mulf %0, %0 : vector<4x10xf32>
    %cst_7 = arith.constant dense<0.000000e+00> : vector<10xf32>
    %7 = vector.multi_reduction <add>, %6, %cst_7 [0] : vector<4x10xf32> to vector<10xf32>
    %8 = vector.shape_cast %7 : vector<10xf32> to vector<1x10xf32>
    %cst_8 = arith.constant 2.500000e-01 : f32
    %9 = vector.broadcast %cst_8 : f32 to vector<1x10xf32>
    %10 = arith.mulf %5, %9 : vector<1x10xf32>
    %cst_9 = arith.constant 2.500000e-01 : f32
    %11 = vector.broadcast %cst_9 : f32 to vector<1x10xf32>
    %12 = arith.mulf %8, %11 : vector<1x10xf32>
    %13 = arith.mulf %10, %10 : vector<1x10xf32>
    %14 = arith.subf %12, %13 : vector<1x10xf32>
    %cst_10 = arith.constant 9.99999974E-6 : f32
    %15 = vector.broadcast %cst_10 : f32 to vector<1x10xf32>
    %16 = arith.addf %14, %15 : vector<1x10xf32>
    %17 = math.rsqrt %16 : vector<1x10xf32>
    %18 = arith.mulf %2, %17 : vector<1x10xf32>
    %19 = arith.mulf %10, %18 : vector<1x10xf32>
    %20 = arith.subf %3, %19 : vector<1x10xf32>
    %21 = vector.broadcast %18 : vector<1x10xf32> to vector<4x10xf32>
    %22 = arith.mulf %0, %21 : vector<4x10xf32>
    %23 = vector.broadcast %20 : vector<1x10xf32> to vector<4x10xf32>
    %24 = arith.addf %22, %23 : vector<4x10xf32>
    %cst_11 = arith.constant 0.000000e+00 : f32
    %25 = vector.broadcast %cst_11 : f32 to vector<4x10xf32>
    %26 = arith.maximumf %24, %25 : vector<4x10xf32>
    %c0_12 = arith.constant 0 : index
    %c0_13 = arith.constant 0 : index
    %27 = vector.load %arg4[%c0_12, %c0_13] : memref<1x10xf32, #tpu.memory_space<vmem>>, vector<1x10xf32>
    %c0_14 = arith.constant 0 : index
    %c0_15 = arith.constant 0 : index
    %28 = vector.load %arg5[%c0_14, %c0_15] : memref<1x10xf32, #tpu.memory_space<vmem>>, vector<1x10xf32>
    %cst_16 = arith.constant dense<0.000000e+00> : vector<10xf32>
    %29 = vector.multi_reduction <add>, %1, %cst_16 [0] : vector<4x10xf32> to vector<10xf32>
    %30 = vector.shape_cast %29 : vector<10xf32> to vector<1x10xf32>
    %31 = arith.mulf %1, %1 : vector<4x10xf32>
    %cst_17 = arith.constant dense<0.000000e+00> : vector<10xf32>
    %32 = vector.multi_reduction <add>, %31, %cst_17 [0] : vector<4x10xf32> to vector<10xf32>
    %33 = vector.shape_cast %32 : vector<10xf32> to vector<1x10xf32>
    %cst_18 = arith.constant 2.500000e-01 : f32
    %34 = vector.broadcast %cst_18 : f32 to vector<1x10xf32>
    %35 = arith.mulf %30, %34 : vector<1x10xf32>
    %cst_19 = arith.constant 2.500000e-01 : f32
    %36 = vector.broadcast %cst_19 : f32 to vector<1x10xf32>
    %37 = arith.mulf %33, %36 : vector<1x10xf32>
    %38 = arith.mulf %35, %35 : vector<1x10xf32>
    %39 = arith.subf %37, %38 : vector<1x10xf32>
    %cst_20 = arith.constant 9.99999974E-6 : f32
    %40 = vector.broadcast %cst_20 : f32 to vector<1x10xf32>
    %41 = arith.addf %39, %40 : vector<1x10xf32>
    %42 = math.rsqrt %41 : vector<1x10xf32>
    %43 = arith.mulf %27, %42 : vector<1x10xf32>
    %44 = arith.mulf %35, %43 : vector<1x10xf32>
    %45 = arith.subf %28, %44 : vector<1x10xf32>
    %46 = vector.broadcast %43 : vector<1x10xf32> to vector<4x10xf32>
    %47 = arith.mulf %1, %46 : vector<4x10xf32>
    %48 = vector.broadcast %45 : vector<1x10xf32> to vector<4x10xf32>
    %49 = arith.addf %47, %48 : vector<4x10xf32>
    %cst_21 = arith.constant 0.000000e+00 : f32
    %50 = vector.broadcast %cst_21 : f32 to vector<4x10xf32>
    %51 = arith.maximumf %49, %50 : vector<4x10xf32>
    %c0_22 = arith.constant 0 : index
    %c0_23 = arith.constant 0 : index
    %52 = vector.load %arg6[%c0_22, %c0_23] : memref<10x20xf32, #tpu.memory_space<vmem>>, vector<10x20xf32>
    %cst_24 = arith.constant dense<0.000000e+00> : vector<4x20xf32>
    %53 = tpu.matmul %26, %52, %cst_24 {dimension_numbers = #tpu.dot_dimension_numbers<[1], [0], [0], [1], [0, 0, 1, 1], [], []>} : vector<4x10xf32>, vector<10x20xf32>, vector<4x20xf32> -> vector<4x20xf32>
    %c0_25 = arith.constant 0 : index
    %c0_26 = arith.constant 0 : index
    %54 = vector.load %arg7[%c0_25, %c0_26] : memref<10x20xf32, #tpu.memory_space<vmem>>, vector<10x20xf32>
    %cst_27 = arith.constant dense<0.000000e+00> : vector<4x20xf32>
    %55 = tpu.matmul %51, %54, %cst_27 {dimension_numbers = #tpu.dot_dimension_numbers<[1], [0], [0], [1], [0, 0, 1, 1], [], []>} : vector<4x10xf32>, vector<10x20xf32>, vector<4x20xf32> -> vector<4x20xf32>
    %56 = arith.addf %53, %55 : vector<4x20xf32>
    %c0_28 = arith.constant 0 : index
    %c0_29 = arith.constant 0 : index
    %57 = vector.load %arg8[%c0_28, %c0_29] : memref<1x20xf32, #tpu.memory_space<vmem>>, vector<1x20xf32>
    %58 = vector.broadcast %57 : vector<1x20xf32> to vector<4x20xf32>
    %59 = arith.addf %56, %58 : vector<4x20xf32>
    %c0_30 = arith.constant 0 : index
    %c0_31 = arith.constant 0 : index
    %60 = vector.load %arg9[%c0_30, %c0_31] : memref<1x20xf32, #tpu.memory_space<vmem>>, vector<1x20xf32>
    %c0_32 = arith.constant 0 : index
    %c0_33 = arith.constant 0 : index
    %61 = vector.load %arg10[%c0_32, %c0_33] : memref<1x20xf32, #tpu.memory_space<vmem>>, vector<1x20xf32>
    %cst_34 = arith.constant dense<0.000000e+00> : vector<20xf32>
    %62 = vector.multi_reduction <add>, %59, %cst_34 [0] : vector<4x20xf32> to vector<20xf32>
    %63 = vector.shape_cast %62 : vector<20xf32> to vector<1x20xf32>
    %64 = arith.mulf %59, %59 : vector<4x20xf32>
    %cst_35 = arith.constant dense<0.000000e+00> : vector<20xf32>
    %65 = vector.multi_reduction <add>, %64, %cst_35 [0] : vector<4x20xf32> to vector<20xf32>
    %66 = vector.shape_cast %65 : vector<20xf32> to vector<1x20xf32>
    %cst_36 = arith.constant 2.500000e-01 : f32
    %67 = vector.broadcast %cst_36 : f32 to vector<1x20xf32>
    %68 = arith.mulf %63, %67 : vector<1x20xf32>
    %cst_37 = arith.constant 2.500000e-01 : f32
    %69 = vector.broadcast %cst_37 : f32 to vector<1x20xf32>
    %70 = arith.mulf %66, %69 : vector<1x20xf32>
    %71 = arith.mulf %68, %68 : vector<1x20xf32>
    %72 = arith.subf %70, %71 : vector<1x20xf32>
    %cst_38 = arith.constant 9.99999974E-6 : f32
    %73 = vector.broadcast %cst_38 : f32 to vector<1x20xf32>
    %74 = arith.addf %72, %73 : vector<1x20xf32>
    %75 = math.rsqrt %74 : vector<1x20xf32>
    %76 = arith.mulf %60, %75 : vector<1x20xf32>
    %77 = arith.mulf %68, %76 : vector<1x20xf32>
    %78 = arith.subf %61, %77 : vector<1x20xf32>
    %79 = vector.broadcast %76 : vector<1x20xf32> to vector<4x20xf32>
    %80 = arith.mulf %59, %79 : vector<4x20xf32>
    %81 = vector.broadcast %78 : vector<1x20xf32> to vector<4x20xf32>
    %82 = arith.addf %80, %81 : vector<4x20xf32>
    %cst_39 = arith.constant 0.000000e+00 : f32
    %83 = vector.broadcast %cst_39 : f32 to vector<4x20xf32>
    %84 = arith.maximumf %82, %83 : vector<4x20xf32>
    %c0_40 = arith.constant 0 : index
    %c0_41 = arith.constant 0 : index
    %85 = vector.load %arg11[%c0_40, %c0_41] : memref<20x10xf32, #tpu.memory_space<vmem>>, vector<20x10xf32>
    %cst_42 = arith.constant dense<0.000000e+00> : vector<4x10xf32>
    %86 = tpu.matmul %84, %85, %cst_42 {dimension_numbers = #tpu.dot_dimension_numbers<[1], [0], [0], [1], [0, 0, 1, 1], [], []>} : vector<4x20xf32>, vector<20x10xf32>, vector<4x10xf32> -> vector<4x10xf32>
    %c0_43 = arith.constant 0 : index
    %c0_44 = arith.constant 0 : index
    %87 = vector.load %arg12[%c0_43, %c0_44] : memref<1x10xf32, #tpu.memory_space<vmem>>, vector<1x10xf32>
    %88 = vector.broadcast %87 : vector<1x10xf32> to vector<4x10xf32>
    %89 = arith.addf %86, %88 : vector<4x10xf32>
    %c0_45 = arith.constant 0 : index
    %c0_46 = arith.constant 0 : index
    %90 = vector.load %arg13[%c0_45, %c0_46] : memref<1x10xf32, #tpu.memory_space<vmem>>, vector<1x10xf32>
    %c0_47 = arith.constant 0 : index
    %c0_48 = arith.constant 0 : index
    %91 = vector.load %arg14[%c0_47, %c0_48] : memref<1x10xf32, #tpu.memory_space<vmem>>, vector<1x10xf32>
    %cst_49 = arith.constant dense<0.000000e+00> : vector<10xf32>
    %92 = vector.multi_reduction <add>, %89, %cst_49 [0] : vector<4x10xf32> to vector<10xf32>
    %93 = vector.shape_cast %92 : vector<10xf32> to vector<1x10xf32>
    %94 = arith.mulf %89, %89 : vector<4x10xf32>
    %cst_50 = arith.constant dense<0.000000e+00> : vector<10xf32>
    %95 = vector.multi_reduction <add>, %94, %cst_50 [0] : vector<4x10xf32> to vector<10xf32>
    %96 = vector.shape_cast %95 : vector<10xf32> to vector<1x10xf32>
    %cst_51 = arith.constant 2.500000e-01 : f32
    %97 = vector.broadcast %cst_51 : f32 to vector<1x10xf32>
    %98 = arith.mulf %93, %97 : vector<1x10xf32>
    %cst_52 = arith.constant 2.500000e-01 : f32
    %99 = vector.broadcast %cst_52 : f32 to vector<1x10xf32>
    %100 = arith.mulf %96, %99 : vector<1x10xf32>
    %101 = arith.mulf %98, %98 : vector<1x10xf32>
    %102 = arith.subf %100, %101 : vector<1x10xf32>
    %cst_53 = arith.constant 9.99999974E-6 : f32
    %103 = vector.broadcast %cst_53 : f32 to vector<1x10xf32>
    %104 = arith.addf %102, %103 : vector<1x10xf32>
    %105 = math.rsqrt %104 : vector<1x10xf32>
    %106 = arith.mulf %90, %105 : vector<1x10xf32>
    %107 = arith.mulf %98, %106 : vector<1x10xf32>
    %108 = arith.subf %91, %107 : vector<1x10xf32>
    %109 = vector.broadcast %106 : vector<1x10xf32> to vector<4x10xf32>
    %110 = arith.mulf %89, %109 : vector<4x10xf32>
    %111 = vector.broadcast %108 : vector<1x10xf32> to vector<4x10xf32>
    %112 = arith.addf %110, %111 : vector<4x10xf32>
    %cst_54 = arith.constant 0.000000e+00 : f32
    %113 = vector.broadcast %cst_54 : f32 to vector<4x10xf32>
    %114 = arith.maximumf %112, %113 : vector<4x10xf32>
    %c0_55 = arith.constant 0 : index
    %c0_56 = arith.constant 0 : index
    %115 = vector.load %arg15[%c0_55, %c0_56] : memref<10x10xf32, #tpu.memory_space<vmem>>, vector<10x10xf32>
    %cst_57 = arith.constant dense<0.000000e+00> : vector<4x10xf32>
    %116 = tpu.matmul %114, %115, %cst_57 {dimension_numbers = #tpu.dot_dimension_numbers<[1], [0], [0], [1], [0, 0, 1, 1], [], []>} : vector<4x10xf32>, vector<10x10xf32>, vector<4x10xf32> -> vector<4x10xf32>
    %c0_58 = arith.constant 0 : index
    %c0_59 = arith.constant 0 : index
    %117 = vector.load %arg16[%c0_58, %c0_59] : memref<1x10xf32, #tpu.memory_space<vmem>>, vector<1x10xf32>
    %118 = vector.broadcast %117 : vector<1x10xf32> to vector<4x10xf32>
    %119 = arith.addf %116, %118 : vector<4x10xf32>
    %c0_60 = arith.constant 0 : index
    %c0_61 = arith.constant 0 : index
    %120 = vector.load %arg17[%c0_60, %c0_61] : memref<1x10xf32, #tpu.memory_space<vmem>>, vector<1x10xf32>
    %c0_62 = arith.constant 0 : index
    %c0_63 = arith.constant 0 : index
    %121 = vector.load %arg18[%c0_62, %c0_63] : memref<1x10xf32, #tpu.memory_space<vmem>>, vector<1x10xf32>
    %cst_64 = arith.constant dense<0.000000e+00> : vector<10xf32>
    %122 = vector.multi_reduction <add>, %119, %cst_64 [0] : vector<4x10xf32> to vector<10xf32>
    %123 = vector.shape_cast %122 : vector<10xf32> to vector<1x10xf32>
    %124 = arith.mulf %119, %119 : vector<4x10xf32>
    %cst_65 = arith.constant dense<0.000000e+00> : vector<10xf32>
    %125 = vector.multi_reduction <add>, %124, %cst_65 [0] : vector<4x10xf32> to vector<10xf32>
    %126 = vector.shape_cast %125 : vector<10xf32> to vector<1x10xf32>
    %cst_66 = arith.constant 2.500000e-01 : f32
    %127 = vector.broadcast %cst_66 : f32 to vector<1x10xf32>
    %128 = arith.mulf %123, %127 : vector<1x10xf32>
    %cst_67 = arith.constant 2.500000e-01 : f32
    %129 = vector.broadcast %cst_67 : f32 to vector<1x10xf32>
    %130 = arith.mulf %126, %129 : vector<1x10xf32>
    %131 = arith.mulf %128, %128 : vector<1x10xf32>
    %132 = arith.subf %130, %131 : vector<1x10xf32>
    %cst_68 = arith.constant 9.99999974E-6 : f32
    %133 = vector.broadcast %cst_68 : f32 to vector<1x10xf32>
    %134 = arith.addf %132, %133 : vector<1x10xf32>
    %135 = math.rsqrt %134 : vector<1x10xf32>
    %136 = arith.mulf %120, %135 : vector<1x10xf32>
    %137 = arith.mulf %128, %136 : vector<1x10xf32>
    %138 = arith.subf %121, %137 : vector<1x10xf32>
    %139 = vector.broadcast %136 : vector<1x10xf32> to vector<4x10xf32>
    %140 = arith.mulf %119, %139 : vector<4x10xf32>
    %141 = vector.broadcast %138 : vector<1x10xf32> to vector<4x10xf32>
    %142 = arith.addf %140, %141 : vector<4x10xf32>
    %cst_69 = arith.constant 0.000000e+00 : f32
    %143 = vector.broadcast %cst_69 : f32 to vector<4x10xf32>
    %144 = arith.maximumf %142, %143 : vector<4x10xf32>
    %c0_70 = arith.constant 0 : index
    %c0_71 = arith.constant 0 : index
    %145 = vector.load %arg19[%c0_70, %c0_71] : memref<10x10xf32, #tpu.memory_space<vmem>>, vector<10x10xf32>
    %cst_72 = arith.constant dense<0.000000e+00> : vector<4x10xf32>
    %146 = tpu.matmul %144, %145, %cst_72 {dimension_numbers = #tpu.dot_dimension_numbers<[1], [0], [0], [1], [0, 0, 1, 1], [], []>} : vector<4x10xf32>, vector<10x10xf32>, vector<4x10xf32> -> vector<4x10xf32>
    %c0_73 = arith.constant 0 : index
    %c0_74 = arith.constant 0 : index
    %147 = vector.load %arg20[%c0_73, %c0_74] : memref<1x10xf32, #tpu.memory_space<vmem>>, vector<1x10xf32>
    %148 = vector.broadcast %147 : vector<1x10xf32> to vector<4x10xf32>
    %149 = arith.addf %146, %148 : vector<4x10xf32>
    %cst_75 = arith.constant dense<0xFF800000> : vector<4xf32>
    %150 = vector.multi_reduction <maximumf>, %149, %cst_75 [1] : vector<4x10xf32> to vector<4xf32>
    %151 = vector.shape_cast %150 : vector<4xf32> to vector<4x1xf32>
    %152 = vector.broadcast %151 : vector<4x1xf32> to vector<4x10xf32>
    %153 = arith.subf %149, %152 : vector<4x10xf32>
    %154 = math.exp %153 : vector<4x10xf32>
    %cst_76 = arith.constant dense<0.000000e+00> : vector<4xf32>
    %155 = vector.multi_reduction <add>, %154, %cst_76 [1] : vector<4x10xf32> to vector<4xf32>
    %156 = vector.shape_cast %155 : vector<4xf32> to vector<4x1xf32>
    %157 = math.log %156 : vector<4x1xf32>
    %158 = vector.broadcast %157 : vector<4x1xf32> to vector<4x10xf32>
    %159 = arith.subf %153, %158 : vector<4x10xf32>
    %c0_77 = arith.constant 0 : index
    %c0_78 = arith.constant 0 : index
    %160 = vector.load %arg21[%c0_77, %c0_78] : memref<4x10xf32, #tpu.memory_space<vmem>>, vector<4x10xf32>
    tpu.vector_store %arg21[%c0_77, %c0_78], %159 {strides = array<i32>} : memref<4x10xf32, #tpu.memory_space<vmem>>, vector<4x10xf32>,
    return
  }
}

</mosaic_0001>

<llo_original>
// kernel: vfl_top_forward.1
$region0: #{vfl_top_forward.1}
  #allocation0 [shape = 'u32[]', space=smem, size = 0x4, offset = 0x4, fixed_abs, tag = 'smem constant byte address 0x4 - core index']
  #allocation1 [shape = 'u32[144,128]{1,0:T(1,128)}', space=vmem, size = 0x12000, scoped, tag = 'internal scratch']
  %s0 = inlined_call_operand.vmem [shape: f32[4,10], index: 0, kind: input, shape index: {}]
  %s1 = inlined_call_operand.vmem [shape: f32[4,10], index: 1, kind: input, shape index: {}]
  %s2 = inlined_call_operand.vmem [shape: f32[1,10], index: 2, kind: input, shape index: {}]
  %s3 = inlined_call_operand.vmem [shape: f32[1,10], index: 3, kind: input, shape index: {}]
  %s4 = inlined_call_operand.vmem [shape: f32[1,10], index: 4, kind: input, shape index: {}]
  %s5 = inlined_call_operand.vmem [shape: f32[1,10], index: 5, kind: input, shape index: {}]
  %s6 = inlined_call_operand.vmem [shape: f32[10,20], index: 6, kind: input, shape index: {}]
  %s7 = inlined_call_operand.vmem [shape: f32[10,20], index: 7, kind: input, shape index: {}]
  %s8 = inlined_call_operand.vmem [shape: f32[1,20], index: 8, kind: input, shape index: {}]
  %s9 = inlined_call_operand.vmem [shape: f32[1,20], index: 9, kind: input, shape index: {}]
  %s10 = inlined_call_operand.vmem [shape: f32[1,20], index: 10, kind: input, shape index: {}]
  %s11 = inlined_call_operand.vmem [shape: f32[20,10], index: 11, kind: input, shape index: {}]
  %s12 = inlined_call_operand.vmem [shape: f32[1,10], index: 12, kind: input, shape index: {}]
  %s13 = inlined_call_operand.vmem [shape: f32[1,10], index: 13, kind: input, shape index: {}]
  %s14 = inlined_call_operand.vmem [shape: f32[1,10], index: 14, kind: input, shape index: {}]
  %s15 = inlined_call_operand.vmem [shape: f32[10,10], index: 15, kind: input, shape index: {}]
  %s16 = inlined_call_operand.vmem [shape: f32[1,10], index: 16, kind: input, shape index: {}]
  %s17 = inlined_call_operand.vmem [shape: f32[1,10], index: 17, kind: input, shape index: {}]
  %s18 = inlined_call_operand.vmem [shape: f32[1,10], index: 18, kind: input, shape index: {}]
  %s19 = inlined_call_operand.vmem [shape: f32[10,10], index: 19, kind: input, shape index: {}]
  %s20 = inlined_call_operand.vmem [shape: f32[1,10], index: 20, kind: input, shape index: {}]
  %s21 = inlined_call_operand.hbm [shape: f32[4,10], index: 21, kind: output, shape index: {}]
  %s22 = sld [smem:[#allocation0]]
  $region94: #{vfl_top_forward.1} parent=0
    _
  %s24 = ssub.s32 1, %s22
  %s25 = scalar_select 0, %s24, %s22
  $region1: #{vfl_top_forward.1} parent=0
    #allocation2 [shape = 'u8[2048]{0}', space=vmem, size = 0x800, scoped, tag = 'output window, operand 0, single buffered']
    #allocation3 [shape = 's32[1]{0}', space=sflag, size = 0x4, scoped, tag = 'scoped memory for vfl_top_forward.1']
    %26 = vsyncpa [#allocation3], 0
    // Predicated region
    $region2: #{vfl_top_forward.1} parent=1 // pred_check
      _
    $region3: #{vfl_top_forward.1} parent=1 // pred_check_branch
      %28 = sbr.rel (0) target = $region5
    $region4: #{vfl_top_forward.1} parent=1 // pred_region
      _
    $region5: #{vfl_top_forward.1} parent=1 // pred_fallthru
      _
    // Predicated region
    $region6: #{vfl_top_forward.1} parent=1 // pred_check
      _
    $region7: #{vfl_top_forward.1} parent=1 // pred_check_branch
      %30 = sbr.rel (0) target = $region9
    $region8: #{vfl_top_forward.1} parent=1 // pred_region
      _
    $region9: #{vfl_top_forward.1} parent=1 // pred_fallthru
      _
    // Predicated region
    $region10: #{vfl_top_forward.1} parent=1 // pred_check
      _
    $region11: #{vfl_top_forward.1} parent=1 // pred_check_branch
      %32 = sbr.rel (0) target = $region13
    $region12: #{vfl_top_forward.1} parent=1 // pred_region
      _
    $region13: #{vfl_top_forward.1} parent=1 // pred_fallthru
      _
    // Predicated region
    $region14: #{vfl_top_forward.1} parent=1 // pred_check
      _
    $region15: #{vfl_top_forward.1} parent=1 // pred_check_branch
      %34 = sbr.rel (0) target = $region17
    $region16: #{vfl_top_forward.1} parent=1 // pred_region
      _
    $region17: #{vfl_top_forward.1} parent=1 // pred_fallthru
      _
    // Predicated region
    $region18: #{vfl_top_forward.1} parent=1 // pred_check
      _
    $region19: #{vfl_top_forward.1} parent=1 // pred_check_branch
      %36 = sbr.rel (0) target = $region21
    $region20: #{vfl_top_forward.1} parent=1 // pred_region
      _
    $region21: #{vfl_top_forward.1} parent=1 // pred_fallthru
      _
    // Predicated region
    $region22: #{vfl_top_forward.1} parent=1 // pred_check
      _
    $region23: #{vfl_top_forward.1} parent=1 // pred_check_branch
      %38 = sbr.rel (0) target = $region25
    $region24: #{vfl_top_forward.1} parent=1 // pred_region
      _
    $region25: #{vfl_top_forward.1} parent=1 // pred_fallthru
      _
    // Predicated region
    $region26: #{vfl_top_forward.1} parent=1 // pred_check
      _
    $region27: #{vfl_top_forward.1} parent=1 // pred_check_branch
      %40 = sbr.rel (0) target = $region29
    $region28: #{vfl_top_forward.1} parent=1 // pred_region
      _
    $region29: #{vfl_top_forward.1} parent=1 // pred_fallthru
      _
    // Predicated region
    $region30: #{vfl_top_forward.1} parent=1 // pred_check
      _
    $region31: #{vfl_top_forward.1} parent=1 // pred_check_branch
      %42 = sbr.rel (0) target = $region33
    $region32: #{vfl_top_forward.1} parent=1 // pred_region
      _
    $region33: #{vfl_top_forward.1} parent=1 // pred_fallthru
      _
    // Predicated region
    $region34: #{vfl_top_forward.1} parent=1 // pred_check
      _
    $region35: #{vfl_top_forward.1} parent=1 // pred_check_branch
      %44 = sbr.rel (0) target = $region37
    $region36: #{vfl_top_forward.1} parent=1 // pred_region
      _
    $region37: #{vfl_top_forward.1} parent=1 // pred_fallthru
      _
    // Predicated region
    $region38: #{vfl_top_forward.1} parent=1 // pred_check
      _
    $region39: #{vfl_top_forward.1} parent=1 // pred_check_branch
      %46 = sbr.rel (0) target = $region41
    $region40: #{vfl_top_forward.1} parent=1 // pred_region
      _
    $region41: #{vfl_top_forward.1} parent=1 // pred_fallthru
      _
    // Predicated region
    $region42: #{vfl_top_forward.1} parent=1 // pred_check
      _
    $region43: #{vfl_top_forward.1} parent=1 // pred_check_branch
      %48 = sbr.rel (0) target = $region45
    $region44: #{vfl_top_forward.1} parent=1 // pred_region
      _
    $region45: #{vfl_top_forward.1} parent=1 // pred_fallthru
      _
    // Predicated region
    $region46: #{vfl_top_forward.1} parent=1 // pred_check
      _
    $region47: #{vfl_top_forward.1} parent=1 // pred_check_branch
      %50 = sbr.rel (0) target = $region49
    $region48: #{vfl_top_forward.1} parent=1 // pred_region
      _
    $region49: #{vfl_top_forward.1} parent=1 // pred_fallthru
      _
    // Predicated region
    $region50: #{vfl_top_forward.1} parent=1 // pred_check
      _
    $region51: #{vfl_top_forward.1} parent=1 // pred_check_branch
      %52 = sbr.rel (0) target = $region53
    $region52: #{vfl_top_forward.1} parent=1 // pred_region
      _
    $region53: #{vfl_top_forward.1} parent=1 // pred_fallthru
      _
    // Predicated region
    $region54: #{vfl_top_forward.1} parent=1 // pred_check
      _
    $region55: #{vfl_top_forward.1} parent=1 // pred_check_branch
      %54 = sbr.rel (0) target = $region57
    $region56: #{vfl_top_forward.1} parent=1 // pred_region
      _
    $region57: #{vfl_top_forward.1} parent=1 // pred_fallthru
      _
    // Predicated region
    $region58: #{vfl_top_forward.1} parent=1 // pred_check
      _
    $region59: #{vfl_top_forward.1} parent=1 // pred_check_branch
      %56 = sbr.rel (0) target = $region61
    $region60: #{vfl_top_forward.1} parent=1 // pred_region
      _
    $region61: #{vfl_top_forward.1} parent=1 // pred_fallthru
      _
    // Predicated region
    $region62: #{vfl_top_forward.1} parent=1 // pred_check
      _
    $region63: #{vfl_top_forward.1} parent=1 // pred_check_branch
      %58 = sbr.rel (0) target = $region65
    $region64: #{vfl_top_forward.1} parent=1 // pred_region
      _
    $region65: #{vfl_top_forward.1} parent=1 // pred_fallthru
      _
    // Predicated region
    $region66: #{vfl_top_forward.1} parent=1 // pred_check
      _
    $region67: #{vfl_top_forward.1} parent=1 // pred_check_branch
      %60 = sbr.rel (0) target = $region69
    $region68: #{vfl_top_forward.1} parent=1 // pred_region
      _
    $region69: #{vfl_top_forward.1} parent=1 // pred_fallthru
      _
    // Predicated region
    $region70: #{vfl_top_forward.1} parent=1 // pred_check
      _
    $region71: #{vfl_top_forward.1} parent=1 // pred_check_branch
      %62 = sbr.rel (0) target = $region73
    $region72: #{vfl_top_forward.1} parent=1 // pred_region
      _
    $region73: #{vfl_top_forward.1} parent=1 // pred_fallthru
      _
    // Predicated region
    $region74: #{vfl_top_forward.1} parent=1 // pred_check
      _
    $region75: #{vfl_top_forward.1} parent=1 // pred_check_branch
      %64 = sbr.rel (0) target = $region77
    $region76: #{vfl_top_forward.1} parent=1 // pred_region
      _
    $region77: #{vfl_top_forward.1} parent=1 // pred_fallthru
      _
    // Predicated region
    $region78: #{vfl_top_forward.1} parent=1 // pred_check
      _
    $region79: #{vfl_top_forward.1} parent=1 // pred_check_branch
      %66 = sbr.rel (0) target = $region81
    $region80: #{vfl_top_forward.1} parent=1 // pred_region
      _
    $region81: #{vfl_top_forward.1} parent=1 // pred_fallthru
      _
    // Predicated region
    $region82: #{vfl_top_forward.1} parent=1 // pred_check
      _
    $region83: #{vfl_top_forward.1} parent=1 // pred_check_branch
      %68 = sbr.rel (0) target = $region85
    $region84: #{vfl_top_forward.1} parent=1 // pred_region
      _
    $region85: #{vfl_top_forward.1} parent=1 // pred_fallthru
      _
    %v69 = vld [vmem:[%s0] sm:$0xf]
    %v70 = vld [vmem:[%s1] sm:$0xf]
    %v71 = vld [vmem:[%s2] sm:$0x1]
    %v72 = vld [vmem:[%s3] sm:$0x1]
    %vm73 = vcmask 76800
    %v74 = vsel %vm73, %v69, 0.0
    %v75 = vrot.slane %v74, 4
    %v76 = vadd.f32 %v74, %v75
    %v77 = vrot.slane %v76, 2
    %v78 = vadd.f32 %v76, %v77
    %v79 = vrot.slane %v78, 1
    %v80 = vadd.f32 %v78, %v79
    %v81 = vmul.f32 %v69, %v69
    %v82 = vsel %vm73, %v81, 0.0
    %v83 = vrot.slane %v82, 4
    %v84 = vadd.f32 %v82, %v83
    %v85 = vrot.slane %v84, 2
    %v86 = vadd.f32 %v84, %v85
    %v87 = vrot.slane %v86, 1
    %v88 = vadd.f32 %v86, %v87
    %v89 = vmul.f32 %v80, 0.25
    %v90 = vmul.f32 %v88, 0.25
    %v91 = vmul.f32 %v89, %v89
    %v92 = vsub.f32 %v90, %v91
    %v93 = vadd.f32 %v92, 1e-05
    %v94 = vrsqrt.pop %v93
    %v95 = vmul.f32 %v71, %v94
    %v96 = vmul.f32 %v89, %v95
    %v97 = vsub.f32 %v72, %v96
    %v99 = vlaneseq
    %v100 = vshrl.u32 %v99, 7
    %v101 = vsub.s32 0, %v100
    %v102 = vrot.slane %v95, %v101
    %v104 = vmul.f32 %v69, %v102
    %v106 = vlaneseq
    %v107 = vshrl.u32 %v106, 7
    %v108 = vsub.s32 0, %v107
    %v109 = vrot.slane %v97, %v108
    %v111 = vadd.f32 %v104, %v109
    %v112 = vmax.f32 %v111, 0.0
    %v113 = vld [vmem:[%s4] sm:$0x1]
    %v114 = vld [vmem:[%s5] sm:$0x1]
    %v115 = vsel %vm73, %v70, 0.0
    %v116 = vrot.slane %v115, 4
    %v117 = vadd.f32 %v115, %v116
    %v118 = vrot.slane %v117, 2
    %v119 = vadd.f32 %v117, %v118
    %v120 = vrot.slane %v119, 1
    %v121 = vadd.f32 %v119, %v120
    %v122 = vmul.f32 %v70, %v70
    %v123 = vsel %vm73, %v122, 0.0
    %v124 = vrot.slane %v123, 4
    %v125 = vadd.f32 %v123, %v124
    %v126 = vrot.slane %v125, 2
    %v127 = vadd.f32 %v125, %v126
    %v128 = vrot.slane %v127, 1
    %v129 = vadd.f32 %v127, %v128
    %v130 = vmul.f32 %v121, 0.25
    %v131 = vmul.f32 %v129, 0.25
    %v132 = vmul.f32 %v130, %v130
    %v133 = vsub.f32 %v131, %v132
    %v134 = vadd.f32 %v133, 1e-05
    %v135 = vrsqrt.pop %v134
    %v136 = vmul.f32 %v113, %v135
    %v137 = vmul.f32 %v130, %v136
    %v138 = vsub.f32 %v114, %v137
    %v140 = vlaneseq
    %v141 = vshrl.u32 %v140, 7
    %v142 = vsub.s32 0, %v141
    %v143 = vrot.slane %v136, %v142
    %v145 = vmul.f32 %v70, %v143
    %v147 = vlaneseq
    %v148 = vshrl.u32 %v147, 7
    %v149 = vsub.s32 0, %v148
    %v150 = vrot.slane %v138, %v149
    %v152 = vadd.f32 %v145, %v150
    %v153 = vmax.f32 %v152, 0.0
    %v154 = vld [vmem:[%s6] sm:$0xff]
    %v155 = vld [vmem:[%s6 + $0x8] sm:$0x3]
    %v156 = vld [vmem:[%s7] sm:$0xff]
    %v157 = vld [vmem:[%s7 + $0x8] sm:$0x3]
    %vm158 = vcmask 80896
    %v160 = vsel %vm158, %v153, 0
    %vm162 = vcmask 1041408
    %v164 = vsel %vm162, %v157, 0
    %166 = vmatprep.subr.mxu0 0.0
    %167 = vmatpush1.msra.mxu0 0.0
    %168 = vmatprep.subr.mxu0 0.0
    %169 = vmatpush1.msra.mxu0 0.0
    %170 = vmatprep.subr.mxu0 0.0
    %171 = vmatpush1.msra.mxu0 0.0
    %172 = vmatprep.subr.mxu0 0.0
    %173 = vmatpush1.msra.mxu0 0.0
    %174 = vmatprep.subr.mxu0 0.0
    %175 = vmatpush1.msra.mxu0 0.0
    %176 = vmatprep.subr.mxu0 0.0
    %177 = vmatpush1.msra.mxu0 0.0
    %178 = vmatprep.subr.mxu0 0.0
    %179 = vmatpush1.msra.mxu0 0.0
    %180 = vmatprep.subr.mxu0 0.0
    %181 = vmatpush1.msra.mxu0 0.0
    %182 = vmatprep.subr.mxu0 0.0
    %183 = vmatpush1.msra.mxu0 0.0
    %184 = vmatprep.subr.mxu0 0.0
    %185 = vmatpush1.msra.mxu0 0.0
    %186 = vmatprep.subr.mxu0 0.0
    %187 = vmatpush1.msra.mxu0 0.0
    %188 = vmatprep.subr.mxu0 0.0
    %189 = vmatpush1.msra.mxu0 0.0
    %190 = vmatprep.subr.mxu0 0.0
    %191 = vmatpush1.msra.mxu0 0.0
    %192 = vmatprep.subr.mxu0 0.0
    %193 = vmatpush1.msra.mxu0 0.0
    %194 = vmatprep.subr.mxu0 0.0
    %195 = vmatpush1.msra.mxu0 %v164
    %196 = vmatprep.subr.mxu0 0.0
    %197 = vmatpush1.msra.mxu0 %v156
    %198 = vmatprep.subr.mxu0 0.0
    %199 = vmatpush2.msra.mxu0 0.0
    %200 = vmatprep.subr.mxu0 0.0
    %201 = vmatpush2.msra.mxu0 0.0
    %202 = vmatprep.subr.mxu0 0.0
    %203 = vmatpush2.msra.mxu0 0.0
    %204 = vmatprep.subr.mxu0 0.0
    %205 = vmatpush2.msra.mxu0 0.0
    %206 = vmatprep.subr.mxu0 0.0
    %207 = vmatpush2.msra.mxu0 0.0
    %208 = vmatprep.subr.mxu0 0.0
    %209 = vmatpush2.msra.mxu0 0.0
    %210 = vmatprep.subr.mxu0 0.0
    %211 = vmatpush2.msra.mxu0 0.0
    %212 = vmatprep.subr.mxu0 0.0
    %213 = vmatpush2.msra.mxu0 0.0
    %214 = vmatprep.subr.mxu0 0.0
    %215 = vmatpush2.msra.mxu0 0.0
    %216 = vmatprep.subr.mxu0 0.0
    %217 = vmatpush2.msra.mxu0 0.0
    %218 = vmatprep.subr.mxu0 0.0
    %219 = vmatpush2.msra.mxu0 0.0
    %220 = vmatprep.subr.mxu0 0.0
    %221 = vmatpush2.msra.mxu0 0.0
    %222 = vmatprep.subr.mxu0 0.0
    %223 = vmatpush2.msra.mxu0 0.0
    %224 = vmatprep.subr.mxu0 0.0
    %225 = vmatpush2.msra.mxu0 0.0
    %226 = vmatprep.subr.mxu0 0.0
    %227 = vmatpush2.msra.mxu0 0.0
    %228 = vmatprep.subr.mxu0 0.0
    %229 = vmatpush2.msra.mxu0 0.0
    %230 = vmatprep.mubr.f32.mxu0 0.0
    %231 = vmatmul.mubr.f32.gmra.mxu0 %v160
    %v232 = vpop.f32.mrf.mxu0
    %v233 = vadd.f32 0.0, %v232
    %v234 = vpop.f32.mrf.mxu0
    %235 = vdwg.mxu0
    %v237 = vsel %vm158, %v112, 0
    %v240 = vsel %vm162, %v155, 0
    %242 = vmatprep.subr.mxu0 0.0
    %243 = vmatpush1.msra.mxu0 0.0
    %244 = vmatprep.subr.mxu0 0.0
    %245 = vmatpush1.msra.mxu0 0.0
    %246 = vmatprep.subr.mxu0 0.0
    %247 = vmatpush1.msra.mxu0 0.0
    %248 = vmatprep.subr.mxu0 0.0
    %249 = vmatpush1.msra.mxu0 0.0
    %250 = vmatprep.subr.mxu0 0.0
    %251 = vmatpush1.msra.mxu0 0.0
    %252 = vmatprep.subr.mxu0 0.0
    %253 = vmatpush1.msra.mxu0 0.0
    %254 = vmatprep.subr.mxu0 0.0
    %255 = vmatpush1.msra.mxu0 0.0
    %256 = vmatprep.subr.mxu0 0.0
    %257 = vmatpush1.msra.mxu0 0.0
    %258 = vmatprep.subr.mxu0 0.0
    %259 = vmatpush1.msra.mxu0 0.0
    %260 = vmatprep.subr.mxu0 0.0
    %261 = vmatpush1.msra.mxu0 0.0
    %262 = vmatprep.subr.mxu0 0.0
    %263 = vmatpush1.msra.mxu0 0.0
    %264 = vmatprep.subr.mxu0 0.0
    %265 = vmatpush1.msra.mxu0 0.0
    %266 = vmatprep.subr.mxu0 0.0
    %267 = vmatpush1.msra.mxu0 0.0
    %268 = vmatprep.subr.mxu0 0.0
    %269 = vmatpush1.msra.mxu0 0.0
    %270 = vmatprep.subr.mxu0 0.0
    %271 = vmatpush1.msra.mxu0 %v240
    %272 = vmatprep.subr.mxu0 0.0
    %273 = vmatpush1.msra.mxu0 %v154
    %274 = vmatprep.subr.mxu0 0.0
    %275 = vmatpush2.msra.mxu0 0.0
    %276 = vmatprep.subr.mxu0 0.0
    %277 = vmatpush2.msra.mxu0 0.0
    %278 = vmatprep.subr.mxu0 0.0
    %279 = vmatpush2.msra.mxu0 0.0
    %280 = vmatprep.subr.mxu0 0.0
    %281 = vmatpush2.msra.mxu0 0.0
    %282 = vmatprep.subr.mxu0 0.0
    %283 = vmatpush2.msra.mxu0 0.0
    %284 = vmatprep.subr.mxu0 0.0
    %285 = vmatpush2.msra.mxu0 0.0
    %286 = vmatprep.subr.mxu0 0.0
    %287 = vmatpush2.msra.mxu0 0.0
    %288 = vmatprep.subr.mxu0 0.0
    %289 = vmatpush2.msra.mxu0 0.0
    %290 = vmatprep.subr.mxu0 0.0
    %291 = vmatpush2.msra.mxu0 0.0
    %292 = vmatprep.subr.mxu0 0.0
    %293 = vmatpush2.msra.mxu0 0.0
    %294 = vmatprep.subr.mxu0 0.0
    %295 = vmatpush2.msra.mxu0 0.0
    %296 = vmatprep.subr.mxu0 0.0
    %297 = vmatpush2.msra.mxu0 0.0
    %298 = vmatprep.subr.mxu0 0.0
    %299 = vmatpush2.msra.mxu0 0.0
    %300 = vmatprep.subr.mxu0 0.0
    %301 = vmatpush2.msra.mxu0 0.0
    %302 = vmatprep.subr.mxu0 0.0
    %303 = vmatpush2.msra.mxu0 0.0
    %304 = vmatprep.subr.mxu0 0.0
    %305 = vmatpush2.msra.mxu0 0.0
    %306 = vmatprep.mubr.f32.mxu0 0.0
    %307 = vmatmul.mubr.f32.gmra.mxu0 %v237
    %v308 = vpop.f32.mrf.mxu0
    %v309 = vadd.f32 %v233, %v308
    %v310 = vpop.f32.mrf.mxu0
    %311 = vdwg.mxu0
    %v312 = vld [vmem:[%s8] sm:$0x1]
    %v314 = vlaneseq
    %v315 = vshrl.u32 %v314, 7
    %v316 = vsub.s32 0, %v315
    %v317 = vrot.slane %v312, %v316
    %v319 = vadd.f32 %v309, %v317
    %v320 = vld [vmem:[%s9] sm:$0x1]
    %v321 = vld [vmem:[%s10] sm:$0x1]
    %vm322 = vcmask 158720
    %v323 = vsel %vm322, %v319, 0.0
    %v324 = vrot.slane %v323, 4
    %v325 = vadd.f32 %v323, %v324
    %v326 = vrot.slane %v325, 2
    %v327 = vadd.f32 %v325, %v326
    %v328 = vrot.slane %v327, 1
    %v329 = vadd.f32 %v327, %v328
    %v330 = vmul.f32 %v319, %v319
    %v331 = vsel %vm322, %v330, 0.0
    %v332 = vrot.slane %v331, 4
    %v333 = vadd.f32 %v331, %v332
    %v334 = vrot.slane %v333, 2
    %v335 = vadd.f32 %v333, %v334
    %v336 = vrot.slane %v335, 1
    %v337 = vadd.f32 %v335, %v336
    %v338 = vmul.f32 %v329, 0.25
    %v339 = vmul.f32 %v337, 0.25
    %v340 = vmul.f32 %v338, %v338
    %v341 = vsub.f32 %v339, %v340
    %v342 = vadd.f32 %v341, 1e-05
    %v343 = vrsqrt.pop %v342
    %v344 = vmul.f32 %v320, %v343
    %v345 = vmul.f32 %v338, %v344
    %v346 = vsub.f32 %v321, %v345
    %v348 = vlaneseq
    %v349 = vshrl.u32 %v348, 7
    %v350 = vsub.s32 0, %v349
    %v351 = vrot.slane %v344, %v350
    %v353 = vmul.f32 %v319, %v351
    %v355 = vlaneseq
    %v356 = vshrl.u32 %v355, 7
    %v357 = vsub.s32 0, %v356
    %v358 = vrot.slane %v346, %v357
    %v360 = vadd.f32 %v353, %v358
    %v361 = vmax.f32 %v360, 0.0
    %v362 = vld [vmem:[%s11] sm:$0xff]
    %v363 = vld [vmem:[%s11 + $0x8] sm:$0xff]
    %v364 = vld [vmem:[%s11 + $0x10] sm:$0xf]
    %v365 = vld [vmem:[%s12] sm:$0x1]
    %v367 = vlaneseq
    %v368 = vshrl.u32 %v367, 7
    %v369 = vsub.s32 0, %v368
    %v370 = vrot.slane %v365, %v369
    %vm372 = vcmask 162816
    %v374 = vsel %vm372, %v361, 0
    %vm376 = vcmask 1043456
    %v378 = vsel %vm376, %v364, 0
    %380 = vmatprep.subr.mxu0 0.0
    %381 = vmatpush1.msra.mxu0 0.0
    %382 = vmatprep.subr.mxu0 0.0
    %383 = vmatpush1.msra.mxu0 0.0
    %384 = vmatprep.subr.mxu0 0.0
    %385 = vmatpush1.msra.mxu0 0.0
    %386 = vmatprep.subr.mxu0 0.0
    %387 = vmatpush1.msra.mxu0 0.0
    %388 = vmatprep.subr.mxu0 0.0
    %389 = vmatpush1.msra.mxu0 0.0
    %390 = vmatprep.subr.mxu0 0.0
    %391 = vmatpush1.msra.mxu0 0.0
    %392 = vmatprep.subr.mxu0 0.0
    %393 = vmatpush1.msra.mxu0 0.0
    %394 = vmatprep.subr.mxu0 0.0
    %395 = vmatpush1.msra.mxu0 0.0
    %396 = vmatprep.subr.mxu0 0.0
    %397 = vmatpush1.msra.mxu0 0.0
    %398 = vmatprep.subr.mxu0 0.0
    %399 = vmatpush1.msra.mxu0 0.0
    %400 = vmatprep.subr.mxu0 0.0
    %401 = vmatpush1.msra.mxu0 0.0
    %402 = vmatprep.subr.mxu0 0.0
    %403 = vmatpush1.msra.mxu0 0.0
    %404 = vmatprep.subr.mxu0 0.0
    %405 = vmatpush1.msra.mxu0 0.0
    %406 = vmatprep.subr.mxu0 0.0
    %407 = vmatpush1.msra.mxu0 %v378
    %408 = vmatprep.subr.mxu0 0.0
    %409 = vmatpush1.msra.mxu0 %v363
    %410 = vmatprep.subr.mxu0 0.0
    %411 = vmatpush1.msra.mxu0 %v362
    %412 = vmatprep.subr.mxu0 0.0
    %413 = vmatpush2.msra.mxu0 0.0
    %414 = vmatprep.subr.mxu0 0.0
    %415 = vmatpush2.msra.mxu0 0.0
    %416 = vmatprep.subr.mxu0 0.0
    %417 = vmatpush2.msra.mxu0 0.0
    %418 = vmatprep.subr.mxu0 0.0
    %419 = vmatpush2.msra.mxu0 0.0
    %420 = vmatprep.subr.mxu0 0.0
    %421 = vmatpush2.msra.mxu0 0.0
    %422 = vmatprep.subr.mxu0 0.0
    %423 = vmatpush2.msra.mxu0 0.0
    %424 = vmatprep.subr.mxu0 0.0
    %425 = vmatpush2.msra.mxu0 0.0
    %426 = vmatprep.subr.mxu0 0.0
    %427 = vmatpush2.msra.mxu0 0.0
    %428 = vmatprep.subr.mxu0 0.0
    %429 = vmatpush2.msra.mxu0 0.0
    %430 = vmatprep.subr.mxu0 0.0
    %431 = vmatpush2.msra.mxu0 0.0
    %432 = vmatprep.subr.mxu0 0.0
    %433 = vmatpush2.msra.mxu0 0.0
    %434 = vmatprep.subr.mxu0 0.0
    %435 = vmatpush2.msra.mxu0 0.0
    %436 = vmatprep.subr.mxu0 0.0
    %437 = vmatpush2.msra.mxu0 0.0
    %438 = vmatprep.subr.mxu0 0.0
    %439 = vmatpush2.msra.mxu0 0.0
    %440 = vmatprep.subr.mxu0 0.0
    %441 = vmatpush2.msra.mxu0 0.0
    %442 = vmatprep.subr.mxu0 0.0
    %443 = vmatpush2.msra.mxu0 0.0
    %444 = vmatprep.mubr.f32.mxu0 0.0
    %445 = vmatmul.mubr.f32.gmra.mxu0 %v374
    %v446 = vpop.f32.mrf.mxu0
    %v447 = vadd.f32 %v370, %v446
    %v448 = vpop.f32.mrf.mxu0
    %449 = vdwg.mxu0
    %v450 = vld [vmem:[%s13] sm:$0x1]
    %v451 = vld [vmem:[%s14] sm:$0x1]
    %v452 = vsel %vm73, %v447, 0.0
    %v453 = vrot.slane %v452, 4
    %v454 = vadd.f32 %v452, %v453
    %v455 = vrot.slane %v454, 2
    %v456 = vadd.f32 %v454, %v455
    %v457 = vrot.slane %v456, 1
    %v458 = vadd.f32 %v456, %v457
    %v459 = vmul.f32 %v447, %v447
    %v460 = vsel %vm73, %v459, 0.0
    %v461 = vrot.slane %v460, 4
    %v462 = vadd.f32 %v460, %v461
    %v463 = vrot.slane %v462, 2
    %v464 = vadd.f32 %v462, %v463
    %v465 = vrot.slane %v464, 1
    %v466 = vadd.f32 %v464, %v465
    %v467 = vmul.f32 %v458, 0.25
    %v468 = vmul.f32 %v466, 0.25
    %v469 = vmul.f32 %v467, %v467
    %v470 = vsub.f32 %v468, %v469
    %v471 = vadd.f32 %v470, 1e-05
    %v472 = vrsqrt.pop %v471
    %v473 = vmul.f32 %v450, %v472
    %v474 = vmul.f32 %v467, %v473
    %v475 = vsub.f32 %v451, %v474
    %v477 = vlaneseq
    %v478 = vshrl.u32 %v477, 7
    %v479 = vsub.s32 0, %v478
    %v480 = vrot.slane %v473, %v479
    %v482 = vmul.f32 %v447, %v480
    %v484 = vlaneseq
    %v485 = vshrl.u32 %v484, 7
    %v486 = vsub.s32 0, %v485
    %v487 = vrot.slane %v475, %v486
    %v489 = vadd.f32 %v482, %v487
    %v490 = vmax.f32 %v489, 0.0
    %v491 = vld [vmem:[%s15] sm:$0xff]
    %v492 = vld [vmem:[%s15 + $0x8] sm:$0x3]
    %v493 = vld [vmem:[%s16] sm:$0x1]
    %v495 = vlaneseq
    %v496 = vshrl.u32 %v495, 7
    %v497 = vsub.s32 0, %v496
    %v498 = vrot.slane %v493, %v497
    %v501 = vsel %vm158, %v490, 0
    %v504 = vsel %vm162, %v492, 0
    %506 = vmatprep.subr.mxu0 0.0
    %507 = vmatpush1.msra.mxu0 0.0
    %508 = vmatprep.subr.mxu0 0.0
    %509 = vmatpush1.msra.mxu0 0.0
    %510 = vmatprep.subr.mxu0 0.0
    %511 = vmatpush1.msra.mxu0 0.0
    %512 = vmatprep.subr.mxu0 0.0
    %513 = vmatpush1.msra.mxu0 0.0
    %514 = vmatprep.subr.mxu0 0.0
    %515 = vmatpush1.msra.mxu0 0.0
    %516 = vmatprep.subr.mxu0 0.0
    %517 = vmatpush1.msra.mxu0 0.0
    %518 = vmatprep.subr.mxu0 0.0
    %519 = vmatpush1.msra.mxu0 0.0
    %520 = vmatprep.subr.mxu0 0.0
    %521 = vmatpush1.msra.mxu0 0.0
    %522 = vmatprep.subr.mxu0 0.0
    %523 = vmatpush1.msra.mxu0 0.0
    %524 = vmatprep.subr.mxu0 0.0
    %525 = vmatpush1.msra.mxu0 0.0
    %526 = vmatprep.subr.mxu0 0.0
    %527 = vmatpush1.msra.mxu0 0.0
    %528 = vmatprep.subr.mxu0 0.0
    %529 = vmatpush1.msra.mxu0 0.0
    %530 = vmatprep.subr.mxu0 0.0
    %531 = vmatpush1.msra.mxu0 0.0
    %532 = vmatprep.subr.mxu0 0.0
    %533 = vmatpush1.msra.mxu0 0.0
    %534 = vmatprep.subr.mxu0 0.0
    %535 = vmatpush1.msra.mxu0 %v504
    %536 = vmatprep.subr.mxu0 0.0
    %537 = vmatpush1.msra.mxu0 %v491
    %538 = vmatprep.subr.mxu0 0.0
    %539 = vmatpush2.msra.mxu0 0.0
    %540 = vmatprep.subr.mxu0 0.0
    %541 = vmatpush2.msra.mxu0 0.0
    %542 = vmatprep.subr.mxu0 0.0
    %543 = vmatpush2.msra.mxu0 0.0
    %544 = vmatprep.subr.mxu0 0.0
    %545 = vmatpush2.msra.mxu0 0.0
    %546 = vmatprep.subr.mxu0 0.0
    %547 = vmatpush2.msra.mxu0 0.0
    %548 = vmatprep.subr.mxu0 0.0
    %549 = vmatpush2.msra.mxu0 0.0
    %550 = vmatprep.subr.mxu0 0.0
    %551 = vmatpush2.msra.mxu0 0.0
    %552 = vmatprep.subr.mxu0 0.0
    %553 = vmatpush2.msra.mxu0 0.0
    %554 = vmatprep.subr.mxu0 0.0
    %555 = vmatpush2.msra.mxu0 0.0
    %556 = vmatprep.subr.mxu0 0.0
    %557 = vmatpush2.msra.mxu0 0.0
    %558 = vmatprep.subr.mxu0 0.0
    %559 = vmatpush2.msra.mxu0 0.0
    %560 = vmatprep.subr.mxu0 0.0
    %561 = vmatpush2.msra.mxu0 0.0
    %562 = vmatprep.subr.mxu0 0.0
    %563 = vmatpush2.msra.mxu0 0.0
    %564 = vmatprep.subr.mxu0 0.0
    %565 = vmatpush2.msra.mxu0 0.0
    %566 = vmatprep.subr.mxu0 0.0
    %567 = vmatpush2.msra.mxu0 0.0
    %568 = vmatprep.subr.mxu0 0.0
    %569 = vmatpush2.msra.mxu0 0.0
    %570 = vmatprep.mubr.f32.mxu0 0.0
    %571 = vmatmul.mubr.f32.gmra.mxu0 %v501
    %v572 = vpop.f32.mrf.mxu0
    %v573 = vadd.f32 %v498, %v572
    %v574 = vpop.f32.mrf.mxu0
    %575 = vdwg.mxu0
    %v576 = vld [vmem:[%s17] sm:$0x1]
    %v577 = vld [vmem:[%s18] sm:$0x1]
    %v578 = vsel %vm73, %v573, 0.0
    %v579 = vrot.slane %v578, 4
    %v580 = vadd.f32 %v578, %v579
    %v581 = vrot.slane %v580, 2
    %v582 = vadd.f32 %v580, %v581
    %v583 = vrot.slane %v582, 1
    %v584 = vadd.f32 %v582, %v583
    %v585 = vmul.f32 %v573, %v573
    %v586 = vsel %vm73, %v585, 0.0
    %v587 = vrot.slane %v586, 4
    %v588 = vadd.f32 %v586, %v587
    %v589 = vrot.slane %v588, 2
    %v590 = vadd.f32 %v588, %v589
    %v591 = vrot.slane %v590, 1
    %v592 = vadd.f32 %v590, %v591
    %v593 = vmul.f32 %v584, 0.25
    %v594 = vmul.f32 %v592, 0.25
    %v595 = vmul.f32 %v593, %v593
    %v596 = vsub.f32 %v594, %v595
    %v597 = vadd.f32 %v596, 1e-05
    %v598 = vrsqrt.pop %v597
    %v599 = vmul.f32 %v576, %v598
    %v600 = vmul.f32 %v593, %v599
    %v601 = vsub.f32 %v577, %v600
    %v603 = vlaneseq
    %v604 = vshrl.u32 %v603, 7
    %v605 = vsub.s32 0, %v604
    %v606 = vrot.slane %v599, %v605
    %v608 = vmul.f32 %v573, %v606
    %v610 = vlaneseq
    %v611 = vshrl.u32 %v610, 7
    %v612 = vsub.s32 0, %v611
    %v613 = vrot.slane %v601, %v612
    %v615 = vadd.f32 %v608, %v613
    %v616 = vmax.f32 %v615, 0.0
    %v617 = vld [vmem:[%s19] sm:$0xff]
    %v618 = vld [vmem:[%s19 + $0x8] sm:$0x3]
    %v619 = vld [vmem:[%s20] sm:$0x1]
    %v621 = vlaneseq
    %v622 = vshrl.u32 %v621, 7
    %v623 = vsub.s32 0, %v622
    %v624 = vrot.slane %v619, %v623
    %v627 = vsel %vm158, %v616, 0
    %v630 = vsel %vm162, %v618, 0
    %632 = vmatprep.subr.mxu0 0.0
    %633 = vmatpush1.msra.mxu0 0.0
    %634 = vmatprep.subr.mxu0 0.0
    %635 = vmatpush1.msra.mxu0 0.0
    %636 = vmatprep.subr.mxu0 0.0
    %637 = vmatpush1.msra.mxu0 0.0
    %638 = vmatprep.subr.mxu0 0.0
    %639 = vmatpush1.msra.mxu0 0.0
    %640 = vmatprep.subr.mxu0 0.0
    %641 = vmatpush1.msra.mxu0 0.0
    %642 = vmatprep.subr.mxu0 0.0
    %643 = vmatpush1.msra.mxu0 0.0
    %644 = vmatprep.subr.mxu0 0.0
    %645 = vmatpush1.msra.mxu0 0.0
    %646 = vmatprep.subr.mxu0 0.0
    %647 = vmatpush1.msra.mxu0 0.0
    %648 = vmatprep.subr.mxu0 0.0
    %649 = vmatpush1.msra.mxu0 0.0
    %650 = vmatprep.subr.mxu0 0.0
    %651 = vmatpush1.msra.mxu0 0.0
    %652 = vmatprep.subr.mxu0 0.0
    %653 = vmatpush1.msra.mxu0 0.0
    %654 = vmatprep.subr.mxu0 0.0
    %655 = vmatpush1.msra.mxu0 0.0
    %656 = vmatprep.subr.mxu0 0.0
    %657 = vmatpush1.msra.mxu0 0.0
    %658 = vmatprep.subr.mxu0 0.0
    %659 = vmatpush1.msra.mxu0 0.0
    %660 = vmatprep.subr.mxu0 0.0
    %661 = vmatpush1.msra.mxu0 %v630
    %662 = vmatprep.subr.mxu0 0.0
    %663 = vmatpush1.msra.mxu0 %v617
    %664 = vmatprep.subr.mxu0 0.0
    %665 = vmatpush2.msra.mxu0 0.0
    %666 = vmatprep.subr.mxu0 0.0
    %667 = vmatpush2.msra.mxu0 0.0
    %668 = vmatprep.subr.mxu0 0.0
    %669 = vmatpush2.msra.mxu0 0.0
    %670 = vmatprep.subr.mxu0 0.0
    %671 = vmatpush2.msra.mxu0 0.0
    %672 = vmatprep.subr.mxu0 0.0
    %673 = vmatpush2.msra.mxu0 0.0
    %674 = vmatprep.subr.mxu0 0.0
    %675 = vmatpush2.msra.mxu0 0.0
    %676 = vmatprep.subr.mxu0 0.0
    %677 = vmatpush2.msra.mxu0 0.0
    %678 = vmatprep.subr.mxu0 0.0
    %679 = vmatpush2.msra.mxu0 0.0
    %680 = vmatprep.subr.mxu0 0.0
    %681 = vmatpush2.msra.mxu0 0.0
    %682 = vmatprep.subr.mxu0 0.0
    %683 = vmatpush2.msra.mxu0 0.0
    %684 = vmatprep.subr.mxu0 0.0
    %685 = vmatpush2.msra.mxu0 0.0
    %686 = vmatprep.subr.mxu0 0.0
    %687 = vmatpush2.msra.mxu0 0.0
    %688 = vmatprep.subr.mxu0 0.0
    %689 = vmatpush2.msra.mxu0 0.0
    %690 = vmatprep.subr.mxu0 0.0
    %691 = vmatpush2.msra.mxu0 0.0
    %692 = vmatprep.subr.mxu0 0.0
    %693 = vmatpush2.msra.mxu0 0.0
    %694 = vmatprep.subr.mxu0 0.0
    %695 = vmatpush2.msra.mxu0 0.0
    %696 = vmatprep.mubr.f32.mxu0 0.0
    %697 = vmatmul.mubr.f32.gmra.mxu0 %v627
    %v698 = vpop.f32.mrf.mxu0
    %v699 = vadd.f32 %v624, %v698
    %v700 = vpop.f32.mrf.mxu0
    %701 = vdwg.mxu0
    %v702 = vsel %vm73, %v699, -inf
    %703 = vmax.xlane.f32.xlu0 %v702
    %v704 = vpop.xlane.xlu0 %703
    %v705 = vsub.f32 %v699, %v704
    %v706 = vmul.f32 %v705, 1.442695
    %v707 = vpow.pop %v706
    %v708 = vsel %vm73, %v707, 0.0
    %709 = vadd.xlane.f32.xlu0 %v708
    %v710 = vpop.xlane.xlu0 %709
    %v711 = vlog2.pop %v710
    %v712 = vmul.f32 %v711, 0.6931472
    %v713 = vsub.f32 %v705, %v712
    %714 = vst.msk [vmem:[#allocation2] sm:$0xf] %vm73, %v713
    // Predicated region
    $region86: #{vfl_top_forward.1} parent=1 // pred_check
      _
    $region87: #{vfl_top_forward.1} parent=1 // pred_check_branch
      %716 = sbr.rel (0) target = $region89
    $region88: #{vfl_top_forward.1} parent=1 // pred_region
      %s718 = ssub.s32 64, 64
      %719 = vsyncadd [#allocation3], %s718
      %s721 = sshll.u32 [#allocation2], 4
      %s722 = int_to_ptr.vmem [resolvable:$true] %s721
      %724 = dma.vmem_to_hbm [thread:$0]  %s722, 64, %s21, [#allocation3]
    $region89: #{vfl_top_forward.1} parent=1 // pred_fallthru
      _
    // Predicated region
    $region90: #{vfl_top_forward.1} parent=1 // pred_check
      _
    $region91: #{vfl_top_forward.1} parent=1 // pred_check_branch
      %726 = sbr.rel (0) target = $region93
    $region92: #{vfl_top_forward.1} parent=1 // pred_region
      %727 = dma.done [#allocation3], 64
    $region93: #{vfl_top_forward.1} parent=1 // pred_fallthru
      _
    %728 = vsyncpa [#allocation3], 1

</llo_original>
